<compile_context>
chip_gen: v6e
topology: v6e:2x2x1
jax: 0.10.0
libtpu: 0.0.40
codegen_flags: <defaults>
</compile_context>

<pallas_src>
import jax
import jax.numpy as jnp
from jax.experimental import pallas as pl
from jax.experimental.pallas import tpu as pltpu


def _round_up(a: int, b: int) -> int:
    return (a + b - 1) // b * b


def _vmem_cap_bytes() -> int:
    """3/4 of physical VMEM: ~48 MiB on v7x, ~96 MiB on v5e/v6e."""
    try:
        phys = int(pltpu.get_tpu_info().vmem_capacity_bytes)
    except Exception:
        phys = 64 << 20  # conservative (v7x-sized) fallback
    return (phys * 3) // 4


def _pad2d(a, rows, cols, dtype):
    r, c = a.shape
    a = a.astype(dtype)          # fuse cast with pad: source touched once
    if r == rows and c == cols:
        return a
    return jnp.zeros((rows, cols), dtype).at[:r, :c].set(a)


def graphsage_kernel(self_ref, adj_ref, xw_ref, o_ref):
    """o[i] = self[i] + sum_k adj[i,k] @ xw[k]  (f32 accumulation in o_ref)."""
    k = pl.program_id(1)

    # Init the resident output block once per row tile (self term + bias,
    # hoisted out of the kernel into the wrapper).
    @pl.when(k == 0)
    def _():
        o_ref[...] = self_ref[...]

    # Single MXU matmul per grid step; f32 accumulate directly into the
    # resident f32 output block (no scratch, no finalize copy).
    o_ref[...] += jnp.dot(adj_ref[...], xw_ref[...],
                          preferred_element_type=jnp.float32)


def graphsage_forward(x, adj, weight, bias, *, tm=512, tk=1024,
                      matmul_dtype=jnp.bfloat16):
    """GraphSAGE layer forward.

    x:(N,F_in) f32, adj:(N,N), weight:(F_out, 2*F_in) torch-style, bias:(F_out,).

    matmul_dtype: dtype of the streamed adj / xw operands. bfloat16 halves the
    dominant N^2 HBM traffic and is exact for a 0/1 adjacency; use float32 for
    a degree-normalized adjacency if bit-tight parity is required.
    """
    n, f_in = x.shape
    f_out, two_f_in = weight.shape
    assert two_f_in == 2 * f_in, "weight must be (F_out, 2*F_in)"

    f_out_p = _round_up(f_out, 128)          # lane-dense output stores

    # Clamp tiles for small graphs; keep bf16-safe (16, 128) alignment.
    tm = max(16, min(tm, _round_up(n, 16)))      # output-row tile
    tk = max(128, min(tk, _round_up(n, 128)))    # adj reduction (column) tile
    n_pad_r = _round_up(n, tm)                   # rows padded to tm,
    n_pad_c = _round_up(n, tk)                   # cols padded to tk (no lcm)

    # Hoisted projections (tiny N x F matmuls, done once in plain XLA).
    w_t = weight.T.astype(jnp.float32)                        # (2*F_in, F_out)
    hi = jax.lax.Precision.HIGHEST
    xw = jnp.dot(x.astype(jnp.float32), w_t[f_in:], precision=hi)          # (N, F_out)
    self_term = jnp.dot(x.astype(jnp.float32), w_t[:f_in], precision=hi) \
        + bias.astype(jnp.float32)                                          # (N, F_out)

    # Padded operands (pad fused with the dtype cast; zeros contribute nothing
    # to the matmul, padded output rows/cols are sliced off below).
    # NOTE: a fully pad-free path would pass `n` via scalar prefetch and mask
    # the ragged last k tile in-kernel; padding is cheap at these sizes.
    adj_p = _pad2d(adj, n_pad_r, n_pad_c, matmul_dtype)
    xw_p = _pad2d(xw, n_pad_c, f_out_p, matmul_dtype)
    self_p = _pad2d(self_term, n_pad_r, f_out_p, jnp.float32)

    grid = (n_pad_r // tm, n_pad_c // tk)

    # VMEM budget: double-buffered streamed tiles + resident self/out blocks,
    # with margin, capped per generation.
    elt_mm = jnp.dtype(matmul_dtype).itemsize
    dbuf = (2 * (tm * tk + tk * f_out_p) * elt_mm     # adj + xw (double-buffered)
            + 2 * 2 * tm * f_out_p * 4)               # self + out blocks (f32)
    vmem_limit = int(min(max(2 * dbuf, 32 << 20), _vmem_cap_bytes()))

    out_pad = pl.pallas_call(
        graphsage_kernel,
        out_shape=jax.ShapeDtypeStruct((n_pad_r, f_out_p), jnp.float32),
        grid=grid,
        in_specs=[
            pl.BlockSpec((tm, f_out_p), lambda i, k: (i, 0)),   # self term
            pl.BlockSpec((tm, tk), lambda i, k: (i, k)),        # adj (streamed)
            pl.BlockSpec((tk, f_out_p), lambda i, k: (k, 0)),   # x @ W_bot
        ],
        out_specs=pl.BlockSpec((tm, f_out_p), lambda i, k: (i, 0)),
        compiler_params=pltpu.CompilerParams(
            dimension_semantics=("parallel", "arbitrary"),
            vmem_limit_bytes=vmem_limit,
        ),
    )(self_p, adj_p, xw_p)

    return out_pad[:n, :f_out]


if __name__ == "__main__":
    num_nodes = 5
    in_features = 3
    out_features = 2

    key = jax.random.PRNGKey(0)
    kx, kw, kb = jax.random.split(key, 3)

    # Inputs matching the module's script: x ~ U[0,1), adj = I.
    x = jax.random.uniform(kx, (num_nodes, in_features), dtype=jnp.float32)
    adj = jnp.eye(num_nodes, dtype=jnp.float32)

    # Deterministic params for nn.Linear(in_features*2, out_features).
    bound = 1.0 / jnp.sqrt(jnp.float32(in_features * 2))
    weight = jax.random.uniform(
        kw, (out_features, in_features * 2), dtype=jnp.float32,
        minval=-bound, maxval=bound)
    bias = jax.random.uniform(
        kb, (out_features,), dtype=jnp.float32, minval=-bound, maxval=bound)

    # Near-exact f32 reference (original association).
    hi = jax.lax.Precision.HIGHEST
    agg_ref = jnp.dot(adj, x, precision=hi)
    ref = jnp.dot(jnp.concatenate([x, agg_ref], axis=1), weight.T,
                  precision=hi) + bias

    # Float32 path: tight parity with the torch float32 reference.
    out_f32 = jax.block_until_ready(
        graphsage_forward(x, adj, weight, bias, matmul_dtype=jnp.float32))
    assert out_f32.shape == (num_nodes, out_features)
    assert jnp.allclose(out_f32, ref, atol=1e-4, rtol=1e-4), "f32 mismatch"

    # Default bf16 path (perf-oriented: halves the N^2 adj HBM stream;
    # adj is 0/1 so only the xw operand sees bf16 rounding).
    out_bf16 = jax.block_until_ready(graphsage_forward(x, adj, weight, bias))
    assert out_bf16.shape == (num_nodes, out_features)
    assert jnp.allclose(out_bf16, ref, atol=3e-2, rtol=3e-2), "bf16 mismatch"

    print("KERNEL_OK")
</pallas_src>

<mosaic_0001>
module attributes {stable_mosaic.version = 11 : i64} {
  func.func @graphsage_kernel(%arg0: i32, %arg1: i32, %arg2: memref<16x128xf32, #tpu.memory_space<vmem>>, %arg3: memref<16x128xf32, #tpu.memory_space<vmem>>, %arg4: memref<128x128xf32, #tpu.memory_space<vmem>>, %arg5: memref<16x128xf32, #tpu.memory_space<vmem>>) attributes {dimension_semantics = [#tpu.dimension_semantics<parallel>, #tpu.dimension_semantics<arbitrary>], iteration_bounds = array<i64: 1, 1>, scalar_prefetch = 0 : i64, scratch_operands = 0 : i64, tpu.core_type = #tpu.core_type<tc>, window_params = [{transform_indices = @transform_0, window_bounds = array<i64: 16, 128>}, {transform_indices = @transform_1, window_bounds = array<i64: 16, 128>}, {transform_indices = @transform_2, window_bounds = array<i64: 128, 128>}, {transform_indices = @transform_3, window_bounds = array<i64: 16, 128>}]} {
    %c0_i32 = arith.constant 0 : i32
    %0 = arith.cmpi eq, %arg1, %c0_i32 : i32
    %1 = arith.extui %0 : i1 to i32
    %c0_i32_0 = arith.constant 0 : i32
    %2 = arith.cmpi ne, %1, %c0_i32_0 : i32
    scf.if %2 {
      %c0_8 = arith.constant 0 : index
      %c0_9 = arith.constant 0 : index
      %9 = vector.load %arg2[%c0_8, %c0_9] : memref<16x128xf32, #tpu.memory_space<vmem>>, vector<16x128xf32>
      %c0_10 = arith.constant 0 : index
      %c0_11 = arith.constant 0 : index
      %10 = vector.load %arg5[%c0_10, %c0_11] : memref<16x128xf32, #tpu.memory_space<vmem>>, vector<16x128xf32>
      tpu.vector_store %arg5[%c0_10, %c0_11], %9 {strides = array<i32>} : memref<16x128xf32, #tpu.memory_space<vmem>>, vector<16x128xf32>,
    } else {
    }
    %c0 = arith.constant 0 : index
    %c0_1 = arith.constant 0 : index
    %3 = vector.load %arg5[%c0, %c0_1] : memref<16x128xf32, #tpu.memory_space<vmem>>, vector<16x128xf32>
    %c0_2 = arith.constant 0 : index
    %c0_3 = arith.constant 0 : index
    %4 = vector.load %arg3[%c0_2, %c0_3] : memref<16x128xf32, #tpu.memory_space<vmem>>, vector<16x128xf32>
    %c0_4 = arith.constant 0 : index
    %c0_5 = arith.constant 0 : index
    %5 = vector.load %arg4[%c0_4, %c0_5] : memref<128x128xf32, #tpu.memory_space<vmem>>, vector<128x128xf32>
    %cst = arith.constant dense<0.000000e+00> : vector<16x128xf32>
    %6 = tpu.matmul %4, %5, %cst {dimension_numbers = #tpu.dot_dimension_numbers<[1], [0], [0], [1], [0, 0, 1, 1], [], []>} : vector<16x128xf32>, vector<128x128xf32>, vector<16x128xf32> -> vector<16x128xf32>
    %7 = arith.addf %3, %6 : vector<16x128xf32>
    %c0_6 = arith.constant 0 : index
    %c0_7 = arith.constant 0 : index
    %8 = vector.load %arg5[%c0_6, %c0_7] : memref<16x128xf32, #tpu.memory_space<vmem>>, vector<16x128xf32>
    tpu.vector_store %arg5[%c0_6, %c0_7], %7 {strides = array<i32>} : memref<16x128xf32, #tpu.memory_space<vmem>>, vector<16x128xf32>,
    return
  }
  func.func @transform_0(%arg0: i32, %arg1: i32) -> (i32, i32) {
    %c0_i32 = arith.constant 0 : i32
    %c0_i32_0 = arith.constant 0 : i32
    return %arg0, %c0_i32 : i32, i32
  }
  func.func @transform_1(%arg0: i32, %arg1: i32) -> (i32, i32) {
    %c0_i32 = arith.constant 0 : i32
    return %arg0, %arg1 : i32, i32
  }
  func.func @transform_2(%arg0: i32, %arg1: i32) -> (i32, i32) {
    %c0_i32 = arith.constant 0 : i32
    %c0_i32_0 = arith.constant 0 : i32
    return %arg1, %c0_i32 : i32, i32
  }
  func.func @transform_3(%arg0: i32, %arg1: i32) -> (i32, i32) {
    %c0_i32 = arith.constant 0 : i32
    %c0_i32_0 = arith.constant 0 : i32
    return %arg0, %c0_i32 : i32, i32
  }
}

</mosaic_0001>

<llo_original>
// kernel: tpu_custom_call.1
$region0: #{tpu_custom_call.1}
  #allocation0 [shape = 'u32[]', space=smem, size = 0x4, offset = 0x4, fixed_abs, tag = 'smem constant byte address 0x4 - core index']
  #allocation1 [shape = 'u32[144,128]{1,0:T(1,128)}', space=vmem, size = 0x12000, scoped, tag = 'internal scratch']
  %s0 = inlined_call_operand.hbm [shape: f32[16,128], index: 0, kind: input, shape index: {}]
  %s1 = inlined_call_operand.hbm [shape: f32[16,128], index: 1, kind: input, shape index: {}]
  %s2 = inlined_call_operand.hbm [shape: f32[128,128], index: 2, kind: input, shape index: {}]
  %s3 = inlined_call_operand.hbm [shape: f32[16,128], index: 3, kind: output, shape index: {}]
  %s4 = sld [smem:[#allocation0]]
  $region38: #{tpu_custom_call.1} parent=0
    _
  %s6 = ssub.s32 1, %s4
  %s7 = scalar_select 0, %s6, %s4
  $region1: #{tpu_custom_call.1} parent=0
    #allocation2 [shape = 'u8[8192]{0}', space=vmem, size = 0x2000, scoped, tag = 'input window, operand 0, single buffered']
    #allocation3 [shape = 's32[1]{0}', space=sflag, size = 0x4, scoped, tag = 'scoped memory for tpu_custom_call.1']
    #allocation4 [shape = 's32[1]{0}', space=sflag, size = 0x4, scoped, tag = 'scoped memory for tpu_custom_call.1']
    #allocation5 [shape = 'u8[8192]{0}', space=vmem, size = 0x2000, scoped, tag = 'input window, operand 1, single buffered']
    #allocation6 [shape = 's32[1]{0}', space=sflag, size = 0x4, scoped, tag = 'scoped memory for tpu_custom_call.1']
    #allocation7 [shape = 'u8[65536]{0}', space=vmem, size = 0x10000, scoped, tag = 'input window, operand 2, single buffered']
    #allocation8 [shape = 'u8[8192]{0}', space=vmem, size = 0x2000, scoped, tag = 'output window, operand 0, single buffered']
    %8 = vsyncpa [#allocation3], 0
    %9 = vsyncpa [#allocation6], 0
    %10 = vsyncpa [#allocation4], 0
    // Predicated region
    $region2: #{tpu_custom_call.1} parent=1 // pred_check
      _
    $region3: #{tpu_custom_call.1} parent=1 // pred_check_branch
      %12 = sbr.rel (0) target = $region5
    $region4: #{tpu_custom_call.1} parent=1 // pred_region
      %s14 = ssub.s32 256, 256
      %15 = vsyncadd [#allocation3], %s14
      %s16 = sshll.u32 [#allocation2], 4
      %s17 = int_to_ptr.vmem [resolvable:$true] %s16
      %22 = dma.hbm_to_vmem [thread:$0]  %s0, 256, %s17, [#allocation3], 128, 128, 8
    $region5: #{tpu_custom_call.1} parent=1 // pred_fallthru
      _
    // Predicated region
    $region6: #{tpu_custom_call.1} parent=1 // pred_check
      _
    $region7: #{tpu_custom_call.1} parent=1 // pred_check_branch
      %24 = sbr.rel (0) target = $region9
    $region8: #{tpu_custom_call.1} parent=1 // pred_region
      %s26 = ssub.s32 256, 256
      %27 = vsyncadd [#allocation6], %s26
      %s28 = sshll.u32 [#allocation5], 4
      %s29 = int_to_ptr.vmem [resolvable:$true] %s28
      %34 = dma.hbm_to_vmem [thread:$0]  %s1, 256, %s29, [#allocation6], 128, 128, 8
    $region9: #{tpu_custom_call.1} parent=1 // pred_fallthru
      _
    // Predicated region
    $region10: #{tpu_custom_call.1} parent=1 // pred_check
      _
    $region11: #{tpu_custom_call.1} parent=1 // pred_check_branch
      %36 = sbr.rel (0) target = $region13
    $region12: #{tpu_custom_call.1} parent=1 // pred_region
      %s38 = ssub.s32 2048, 2048
      %39 = vsyncadd [#allocation6], %s38
      %s40 = sshll.u32 [#allocation7], 4
      %s41 = int_to_ptr.vmem [resolvable:$true] %s40
      %46 = dma.hbm_to_vmem [thread:$0]  %s2, 2048, %s41, [#allocation6], 128, 128, 8
    $region13: #{tpu_custom_call.1} parent=1 // pred_fallthru
      _
    // Predicated region
    $region14: #{tpu_custom_call.1} parent=1 // pred_check
      _
    $region15: #{tpu_custom_call.1} parent=1 // pred_check_branch
      %48 = sbr.rel (0) target = $region17
    $region16: #{tpu_custom_call.1} parent=1 // pred_region
      %49 = dma.done [#allocation3], 256
    $region17: #{tpu_custom_call.1} parent=1 // pred_fallthru
      _
    // Predicated region
    $region18: #{tpu_custom_call.1} parent=1 // pred_check
      _
    $region19: #{tpu_custom_call.1} parent=1 // pred_check_branch
      %51 = sbr.rel (0) target = $region21
    $region20: #{tpu_custom_call.1} parent=1 // pred_region
      %52 = dma.done [#allocation6], 256
    $region21: #{tpu_custom_call.1} parent=1 // pred_fallthru
      _
    // Predicated region
    $region22: #{tpu_custom_call.1} parent=1 // pred_check
      _
    $region23: #{tpu_custom_call.1} parent=1 // pred_check_branch
      %54 = sbr.rel (0) target = $region25
    $region24: #{tpu_custom_call.1} parent=1 // pred_region
      %55 = dma.done [#allocation6], 2048
    $region25: #{tpu_custom_call.1} parent=1 // pred_fallthru
      _
    %p56 = scmp.eq.s32.totalorder 0, 0
    // Predicated region
    $region26: #{tpu_custom_call.1} parent=1 // pred_check
      %p57 = pneg %p56
    $region27: #{tpu_custom_call.1} parent=1 // pred_check_branch
      %59 = sbr.rel (%p57) target = $region29
    $region28: #{tpu_custom_call.1} parent=1 // pred_region
      %v60 = vld [vmem:[#allocation2] sm:$0xff]
      %v61 = vld [vmem:[#allocation2 + $0x8] sm:$0xff]
      %62 = vst [vmem:[#allocation8] sm:$0xff] %v60
      %63 = vst [vmem:[#allocation8 + $0x8] sm:$0xff] %v61
    $region29: #{tpu_custom_call.1} parent=1 // pred_fallthru
      _
    %v64 = vld [vmem:[#allocation8] sm:$0xff]
    %v65 = vld [vmem:[#allocation8 + $0x8] sm:$0xff]
    %v66 = vld [vmem:[#allocation5] sm:$0xff]
    %v67 = vld [vmem:[#allocation5 + $0x8] sm:$0xff]
    %v68 = vld [vmem:[#allocation7] sm:$0xff]
    %v69 = vld [vmem:[#allocation7 + $0x8] sm:$0xff]
    %v70 = vld [vmem:[#allocation7 + $0x10] sm:$0xff]
    %v71 = vld [vmem:[#allocation7 + $0x18] sm:$0xff]
    %v72 = vld [vmem:[#allocation7 + $0x20] sm:$0xff]
    %v73 = vld [vmem:[#allocation7 + $0x28] sm:$0xff]
    %v74 = vld [vmem:[#allocation7 + $0x30] sm:$0xff]
    %v75 = vld [vmem:[#allocation7 + $0x38] sm:$0xff]
    %v76 = vld [vmem:[#allocation7 + $0x40] sm:$0xff]
    %v77 = vld [vmem:[#allocation7 + $0x48] sm:$0xff]
    %v78 = vld [vmem:[#allocation7 + $0x50] sm:$0xff]
    %v79 = vld [vmem:[#allocation7 + $0x58] sm:$0xff]
    %v80 = vld [vmem:[#allocation7 + $0x60] sm:$0xff]
    %v81 = vld [vmem:[#allocation7 + $0x68] sm:$0xff]
    %v82 = vld [vmem:[#allocation7 + $0x70] sm:$0xff]
    %v83 = vld [vmem:[#allocation7 + $0x78] sm:$0xff]
    %84 = vmatprep.subr.mxu0 0.0
    %85 = vmatpush1.msra.mxu0 %v83
    %86 = vmatprep.subr.mxu0 0.0
    %87 = vmatpush1.msra.mxu0 %v82
    %88 = vmatprep.subr.mxu0 0.0
    %89 = vmatpush1.msra.mxu0 %v81
    %90 = vmatprep.subr.mxu0 0.0
    %91 = vmatpush1.msra.mxu0 %v80
    %92 = vmatprep.subr.mxu0 0.0
    %93 = vmatpush1.msra.mxu0 %v79
    %94 = vmatprep.subr.mxu0 0.0
    %95 = vmatpush1.msra.mxu0 %v78
    %96 = vmatprep.subr.mxu0 0.0
    %97 = vmatpush1.msra.mxu0 %v77
    %98 = vmatprep.subr.mxu0 0.0
    %99 = vmatpush1.msra.mxu0 %v76
    %100 = vmatprep.subr.mxu0 0.0
    %101 = vmatpush1.msra.mxu0 %v75
    %102 = vmatprep.subr.mxu0 0.0
    %103 = vmatpush1.msra.mxu0 %v74
    %104 = vmatprep.subr.mxu0 0.0
    %105 = vmatpush1.msra.mxu0 %v73
    %106 = vmatprep.subr.mxu0 0.0
    %107 = vmatpush1.msra.mxu0 %v72
    %108 = vmatprep.subr.mxu0 0.0
    %109 = vmatpush1.msra.mxu0 %v71
    %110 = vmatprep.subr.mxu0 0.0
    %111 = vmatpush1.msra.mxu0 %v70
    %112 = vmatprep.subr.mxu0 0.0
    %113 = vmatpush1.msra.mxu0 %v69
    %114 = vmatprep.subr.mxu0 0.0
    %115 = vmatpush1.msra.mxu0 %v68
    %116 = vmatprep.subr.mxu0 0.0
    %117 = vmatpush2.msra.mxu0 0.0
    %118 = vmatprep.subr.mxu0 0.0
    %119 = vmatpush2.msra.mxu0 0.0
    %120 = vmatprep.subr.mxu0 0.0
    %121 = vmatpush2.msra.mxu0 0.0
    %122 = vmatprep.subr.mxu0 0.0
    %123 = vmatpush2.msra.mxu0 0.0
    %124 = vmatprep.subr.mxu0 0.0
    %125 = vmatpush2.msra.mxu0 0.0
    %126 = vmatprep.subr.mxu0 0.0
    %127 = vmatpush2.msra.mxu0 0.0
    %128 = vmatprep.subr.mxu0 0.0
    %129 = vmatpush2.msra.mxu0 0.0
    %130 = vmatprep.subr.mxu0 0.0
    %131 = vmatpush2.msra.mxu0 0.0
    %132 = vmatprep.subr.mxu0 0.0
    %133 = vmatpush2.msra.mxu0 0.0
    %134 = vmatprep.subr.mxu0 0.0
    %135 = vmatpush2.msra.mxu0 0.0
    %136 = vmatprep.subr.mxu0 0.0
    %137 = vmatpush2.msra.mxu0 0.0
    %138 = vmatprep.subr.mxu0 0.0
    %139 = vmatpush2.msra.mxu0 0.0
    %140 = vmatprep.subr.mxu0 0.0
    %141 = vmatpush2.msra.mxu0 0.0
    %142 = vmatprep.subr.mxu0 0.0
    %143 = vmatpush2.msra.mxu0 0.0
    %144 = vmatprep.subr.mxu0 0.0
    %145 = vmatpush2.msra.mxu0 0.0
    %146 = vmatprep.subr.mxu0 0.0
    %147 = vmatpush2.msra.mxu0 0.0
    %148 = vmatprep.mubr.f32.mxu0 0.0
    %149 = vmatmul.mubr.f32.gmra.mxu0 %v66
    %v150 = vpop.f32.mrf.mxu0
    %v151 = vadd.f32 0.0, %v150
    %v152 = vpop.f32.mrf.mxu0
    %153 = vmatprep.mubr.f32.mxu0 0.0
    %154 = vmatmul.mubr.f32.gmra.mxu0 %v67
    %v155 = vpop.f32.mrf.mxu0
    %v156 = vadd.f32 0.0, %v155
    %v157 = vpop.f32.mrf.mxu0
    %158 = vdwg.mxu0
    %v159 = vadd.f32 %v64, %v151
    %v160 = vadd.f32 %v65, %v156
    %161 = vst [vmem:[#allocation8] sm:$0xff] %v159
    %162 = vst [vmem:[#allocation8 + $0x8] sm:$0xff] %v160
    // Predicated region
    $region30: #{tpu_custom_call.1} parent=1 // pred_check
      _
    $region31: #{tpu_custom_call.1} parent=1 // pred_check_branch
      %164 = sbr.rel (0) target = $region33
    $region32: #{tpu_custom_call.1} parent=1 // pred_region
      %s166 = ssub.s32 256, 256
      %167 = vsyncadd [#allocation4], %s166
      %s168 = sshll.u32 [#allocation8], 4
      %s169 = int_to_ptr.vmem [resolvable:$true] %s168
      %174 = dma.vmem_to_hbm [thread:$0]  %s169, 256, %s3, [#allocation4], 128, 128, 8
    $region33: #{tpu_custom_call.1} parent=1 // pred_fallthru
      _
    // Predicated region
    $region34: #{tpu_custom_call.1} parent=1 // pred_check
      _
    $region35: #{tpu_custom_call.1} parent=1 // pred_check_branch
      %176 = sbr.rel (0) target = $region37
    $region36: #{tpu_custom_call.1} parent=1 // pred_region
      %177 = dma.done [#allocation4], 256
    $region37: #{tpu_custom_call.1} parent=1 // pred_fallthru
      _
    %178 = vsyncpa [#allocation3], 1
    %179 = vsyncpa [#allocation6], 1
    %180 = vsyncpa [#allocation4], 1

</llo_original>
